<compile_context>
chip_gen: v7x
topology: tpu7x:2x2x1
jax: 0.10.0
libtpu: 0.0.40
codegen_flags: <defaults>
</compile_context>

<pallas_src>
import math
from functools import partial

import jax
import jax.numpy as jnp
from jax.experimental import pallas as pl
from jax.experimental.pallas import tpu as pltpu


# ---------------------------------------------------------------------------
# Helpers
# ---------------------------------------------------------------------------

def _pick_tile(dim, preferred):
    """Largest preferred tile that divides `dim`; otherwise use the full dim."""
    for t in preferred:
        if dim >= t and dim % t == 0:
            return t
    return dim


def _tile_rows(n, preferred=(512, 256, 128)):
    """Pick a row tile and the padded row count.

    Large n -> aligned tile + pad up (keeps software pipelining / lane-dense stores);
    small n -> single block rounded up to the sublane multiple of 8.
    """
    for t in preferred:
        if n >= t:
            return t, int(pl.cdiv(n, t)) * t
    padded = max(8, ((n + 7) // 8) * 8)
    return padded, padded


def _pick_tq(batch, seq_len):
    """Query-row tile for the attention kernel.

    Prefers >=256 rows (fills the 256x256 MXU face on v6e/v7x) but makes sure the parallel
    grid has at least 2 steps so v7x's 2 TensorCores both get work.
    """
    tq, lp = _tile_rows(seq_len, (256, 128))
    if batch * (lp // tq) < 2 and tq > 128 and lp // 128 >= 2:
        tq = 128
    return tq, lp


def _vmem_limit_bytes():
    """Raise the scoped VMEM limit above the 32 MiB default, leaving per-chip headroom."""
    try:
        phys = pltpu.get_tpu_info().vmem_capacity_bytes   # 128 MiB v5e/v6e, 64 MiB v7x
    except Exception:
        return None                                       # fall back to the compiler default
    return int(min(96 << 20, (phys * 3) // 4))


_RESIDENT_W_BYTES = 8 << 20   # weights below this stay fully resident in VMEM


# ---------------------------------------------------------------------------
# Tiled linear projection:  out = x @ w + b
# ---------------------------------------------------------------------------

def _linear_resident_kernel(x_ref, w_ref, b_ref, o_ref, *, compute_dtype):
    # Weight block index is constant across the grid -> DMA'd once, stays resident.
    acc = jnp.dot(x_ref[...].astype(compute_dtype), w_ref[...].astype(compute_dtype),
                  preferred_element_type=jnp.float32)
    o_ref[...] = (acc + b_ref[...]).astype(o_ref.dtype)


def _linear_tiled_k_kernel(x_ref, w_ref, b_ref, o_ref, acc_ref, *, compute_dtype):
    k = pl.program_id(1)

    @pl.when(k == 0)
    def _():
        acc_ref[...] = jnp.zeros_like(acc_ref)

    acc_ref[...] += jnp.dot(x_ref[...].astype(compute_dtype), w_ref[...].astype(compute_dtype),
                            preferred_element_type=jnp.float32)

    @pl.when(k == pl.num_programs(1) - 1)
    def _():
        o_ref[...] = (acc_ref[...] + b_ref[...]).astype(o_ref.dtype)


def linear_pallas(x, w, b, *, compute_dtype=jnp.bfloat16):
    """x: (M, K), w: (K, N), b: (N,) -> (M, N). Rows padded to an aligned tile."""
    M, K = x.shape
    _, N = w.shape
    tm, Mp = _tile_rows(M, (512, 256, 128))
    if Mp != M:
        x = jnp.pad(x, ((0, Mp - M), (0, 0)))

    vmem_limit = _vmem_limit_bytes()
    cost = pl.CostEstimate(
        flops=2 * Mp * N * K,
        transcendentals=0,
        bytes_accessed=(Mp * K + K * N + Mp * N) * x.dtype.itemsize + N * b.dtype.itemsize,
    )

    if K * N * w.dtype.itemsize <= _RESIDENT_W_BYTES:
        # Typical d_model: keep the whole weight resident, 1-D grid over row tiles.
        out = pl.pallas_call(
            partial(_linear_resident_kernel, compute_dtype=compute_dtype),
            out_shape=jax.ShapeDtypeStruct((Mp, N), x.dtype),
            grid=(Mp // tm,),
            in_specs=[
                pl.BlockSpec((tm, K), lambda i: (i, 0)),
                pl.BlockSpec((K, N), lambda i: (0, 0)),    # constant index -> resident weight
                pl.BlockSpec((1, N), lambda i: (0, 0)),
            ],
            out_specs=pl.BlockSpec((tm, N), lambda i: (i, 0)),
            compiler_params=pltpu.CompilerParams(
                dimension_semantics=("parallel",),
                vmem_limit_bytes=vmem_limit),
            cost_estimate=cost,
        )(x, w, b.reshape(1, N))
    else:
        tk = _pick_tile(K, (512, 256, 128))
        out = pl.pallas_call(
            partial(_linear_tiled_k_kernel, compute_dtype=compute_dtype),
            out_shape=jax.ShapeDtypeStruct((Mp, N), x.dtype),
            grid=(Mp // tm, K // tk),
            in_specs=[
                pl.BlockSpec((tm, tk), lambda i, k: (i, k)),
                pl.BlockSpec((tk, N), lambda i, k: (k, 0)),
                pl.BlockSpec((1, N), lambda i, k: (0, 0)),
            ],
            out_specs=pl.BlockSpec((tm, N), lambda i, k: (i, 0)),
            scratch_shapes=[pltpu.VMEM((tm, N), jnp.float32)],
            compiler_params=pltpu.CompilerParams(
                dimension_semantics=("parallel", "arbitrary"),
                vmem_limit_bytes=vmem_limit),
            cost_estimate=cost,
        )(x, w, b.reshape(1, N))

    return out[:M] if Mp != M else out


# ---------------------------------------------------------------------------
# Fused: Q projection + multi-head attention + output projection
# ---------------------------------------------------------------------------

def _fused_attn_kernel(x_ref, kv_ref, wq_ref, bq_ref, wo_ref, bo_ref, *rest,
                       n_heads, d_keys, d_values, output_attention, compute_dtype):
    # x:  (1, tq, Dm) raw queries     kv: (1, S, H*E + H*Dv) projected keys|values
    # wq: (Dm, H*E)  bq: (1, H*E)     wo: (H*Dv, Dm)  bo: (1, Dm)
    # outputs: o (1, tq, Dm) [, a (1, H, tq, S)] ; scratch: heads (tq, H*Dv)
    if output_attention:
        o_ref, a_ref, heads_ref = rest
    else:
        (o_ref, heads_ref), a_ref = rest, None

    H, E, Dv = n_heads, d_keys, d_values
    HE = H * E
    scale = 1.0 / math.sqrt(E)
    cdt = compute_dtype

    # Fused Q projection: the projected q tensor never round-trips through HBM.
    x = x_ref[0].astype(cdt)                                           # (tq, Dm)
    q = jnp.dot(x, wq_ref[...].astype(cdt),
                preferred_element_type=jnp.float32) + bq_ref[...]      # (tq, H*E) f32
    q = (q * scale).astype(cdt)                                        # fold 1/sqrt(E) into q

    kv = kv_ref[0]                                                     # (S, H*E + H*Dv)

    # TODO(synk): per-head lane slices at h*E offsets cost an XLU relayout when E is not a
    #             multiple of 128; a BlockSpec-level head split would remove it.
    for h in range(H):                          # small static head loop (unrolled)
        qh = q[:, h * E:(h + 1) * E]
        kh = kv[:, h * E:(h + 1) * E].astype(cdt)
        vh = kv[:, HE + h * Dv:HE + (h + 1) * Dv].astype(cdt)

        scores = jnp.dot(qh, kh.T, preferred_element_type=jnp.float32)  # (tq, S) f32
        m = jnp.max(scores, axis=-1, keepdims=True)
        p = jnp.exp(scores - m)                                         # softmax math kept f32
        denom = jnp.sum(p, axis=-1, keepdims=True)

        if a_ref is not None:
            attn = p / denom                     # exact softmax for the returned attention matrix
            a_ref[0, h, :, :] = attn.astype(a_ref.dtype)
            oh = jnp.dot(attn.astype(cdt), vh, preferred_element_type=jnp.float32)
        else:
            # Defer normalization until after the PV matmul: tq*Dv multiplies instead of tq*S.
            oh = jnp.dot(p.astype(cdt), vh, preferred_element_type=jnp.float32)
            oh = oh * pl.reciprocal(denom, approx=True)

        # Head result goes through VMEM scratch -> only one head's output is live at a time.
        heads_ref[:, h * Dv:(h + 1) * Dv] = oh.astype(heads_ref.dtype)

    # Fused output projection: lane-dense (tq, H*Dv) x (H*Dv, Dm) contraction.
    out = jnp.dot(heads_ref[...].astype(cdt), wo_ref[...].astype(cdt),
                  preferred_element_type=jnp.float32) + bo_ref[...]
    o_ref[0] = out.astype(o_ref.dtype)


def fused_attention_pallas(queries, kv, wq, bq, wo, bo, *, n_heads, d_keys, d_values,
                           output_attention=True, compute_dtype=jnp.bfloat16,
                           attn_dtype=None):
    """queries: (B, L, Dm) raw input; kv: (B, S, H*E + H*Dv) projected keys|values.
       Returns out: (B, L, Dm), attn: (B, H, L, S) (or None)."""
    B, L, Dm = queries.shape
    _, S, HEHD = kv.shape
    H, E, Dv = n_heads, d_keys, d_values
    HE, HDv = H * E, H * Dv
    D = wo.shape[1]
    attn_dtype = attn_dtype or queries.dtype   # pass jnp.bfloat16 to halve the attn HBM stream

    tq, Lp = _pick_tq(B, L)
    if Lp != L:
        queries = jnp.pad(queries, ((0, 0), (0, Lp - L), (0, 0)))

    kernel = partial(_fused_attn_kernel, n_heads=H, d_keys=E, d_values=Dv,
                     output_attention=output_attention, compute_dtype=compute_dtype)

    in_specs = [
        pl.BlockSpec((1, tq, Dm), lambda b, i: (b, i, 0)),
        pl.BlockSpec((1, S, HEHD), lambda b, i: (b, 0, 0)),   # K|V resident per batch row
        pl.BlockSpec((Dm, HE), lambda b, i: (0, 0)),          # resident weights
        pl.BlockSpec((1, HE), lambda b, i: (0, 0)),
        pl.BlockSpec((HDv, D), lambda b, i: (0, 0)),
        pl.BlockSpec((1, D), lambda b, i: (0, 0)),
    ]
    o_shape = jax.ShapeDtypeStruct((B, Lp, D), queries.dtype)
    o_spec = pl.BlockSpec((1, tq, D), lambda b, i: (b, i, 0))
    if output_attention:
        out_shape = (o_shape, jax.ShapeDtypeStruct((B, H, Lp, S), attn_dtype))
        out_specs = (o_spec, pl.BlockSpec((1, H, tq, S), lambda b, i: (b, 0, i, 0)))
        attn_bytes = B * H * Lp * S * jnp.dtype(attn_dtype).itemsize
    else:
        out_shape, out_specs = o_shape, o_spec
        attn_bytes = 0

    cost = pl.CostEstimate(
        flops=2 * B * Lp * Dm * HE + 2 * B * H * Lp * S * (E + Dv) + 2 * B * Lp * HDv * D,
        transcendentals=B * H * Lp * S,
        bytes_accessed=(queries.size + kv.size + B * Lp * D) * queries.dtype.itemsize
                       + attn_bytes + (Dm * HE + HE + HDv * D + D) * wq.dtype.itemsize,
    )

    res = pl.pallas_call(
        kernel,
        out_shape=out_shape,
        grid=(B, Lp // tq),
        in_specs=in_specs,
        out_specs=out_specs,
        scratch_shapes=[pltpu.VMEM((tq, HDv), compute_dtype)],
        compiler_params=pltpu.CompilerParams(
            dimension_semantics=("parallel", "parallel"),
            vmem_limit_bytes=_vmem_limit_bytes()),
        cost_estimate=cost,
    )(queries, kv, wq, bq.reshape(1, HE), wo, bo.reshape(1, D))

    if output_attention:
        out, attn = res
    else:
        out, attn = res, None
    if Lp != L:
        out = out[:, :L]
        if attn is not None:
            attn = attn[:, :, :L]
    return out, attn


# ---------------------------------------------------------------------------
# Parameters + layer forward
# ---------------------------------------------------------------------------

def init_params(key, d_model, n_heads, d_keys=None, d_values=None):
    d_keys = d_keys or d_model // n_heads
    d_values = d_values or d_model // n_heads
    ks = jax.random.split(key, 8)

    def linear_init(kw, kb, fan_in, fan_out):
        bound = 1.0 / math.sqrt(fan_in)
        w = jax.random.uniform(kw, (fan_in, fan_out), jnp.float32, -bound, bound)
        b = jax.random.uniform(kb, (fan_out,), jnp.float32, -bound, bound)
        return w, b

    wq, bq = linear_init(ks[0], ks[1], d_model, d_keys * n_heads)
    wk, bk = linear_init(ks[2], ks[3], d_model, d_keys * n_heads)
    wv, bv = linear_init(ks[4], ks[5], d_model, d_values * n_heads)
    wo, bo = linear_init(ks[6], ks[7], d_values * n_heads, d_model)
    return dict(wq=wq, bq=bq, wk=wk, bk=bk, wv=wv, bv=bv, wo=wo, bo=bo)


def spectral_interaction_layer(params, queries, keys, values, attn_mask, n_heads,
                               output_attention=True, compute_dtype=jnp.bfloat16,
                               attn_dtype=None):
    """Forward pass matching SpectralInteractionLayer.forward (attn_mask assumed None)."""
    # TODO(synk): attn_mask is accepted but not applied (assumed None, as in the reference usage).
    B, L, Dm = queries.shape
    _, S, _ = keys.shape
    H = n_heads

    wq, bq = params["wq"], params["bq"]
    wk, bk = params["wk"], params["bk"]
    wv, bv = params["wv"], params["bv"]
    wo, bo = params["wo"], params["bo"]
    HE, HDv = wq.shape[1], wv.shape[1]
    E, Dv = HE // H, HDv // H

    if keys is values:
        # Fused K/V projection: one pass over the keys tensor with a (Dm, HE+HDv) weight;
        # the combined tensor feeds the attention kernel directly (no split copies).
        wkv = jnp.concatenate([wk, wv], axis=1)
        bkv = jnp.concatenate([bk, bv], axis=0)
        kv = linear_pallas(keys.reshape(B * S, Dm), wkv, bkv,
                           compute_dtype=compute_dtype).reshape(B, S, HE + HDv)
    else:
        k = linear_pallas(keys.reshape(B * S, Dm), wk, bk, compute_dtype=compute_dtype)
        v = linear_pallas(values.reshape(B * S, Dm), wv, bv, compute_dtype=compute_dtype)
        kv = jnp.concatenate([k, v], axis=-1).reshape(B, S, HE + HDv)

    # Q projection + attention + output projection fused into one kernel.
    out, attn = fused_attention_pallas(
        queries, kv, wq, bq, wo, bo,
        n_heads=H, d_keys=E, d_values=Dv,
        output_attention=output_attention,
        compute_dtype=compute_dtype, attn_dtype=attn_dtype)
    return out, attn


# ---------------------------------------------------------------------------
# Main
# ---------------------------------------------------------------------------

if __name__ == "__main__":
    B, L, S, d_model, n_heads = 2, 8, 8, 32, 4

    key = jax.random.PRNGKey(0)
    kq, kk, kv, kp = jax.random.split(key, 4)
    queries = jax.random.normal(kq, (B, L, d_model), jnp.float32)
    keys_in = jax.random.normal(kk, (B, S, d_model), jnp.float32)
    values = jax.random.normal(kv, (B, S, d_model), jnp.float32)
    attn_mask = None

    params = init_params(kp, d_model, n_heads)

    # Path 1: distinct keys/values, attention matrix returned (matches the PyTorch call).
    out, attn = spectral_interaction_layer(
        params, queries, keys_in, values, attn_mask, n_heads, output_attention=True)
    jax.block_until_ready((out, attn))
    assert out.shape == (B, L, d_model)
    assert attn.shape == (B, n_heads, L, S)

    # Path 2: self-attention call pattern (keys is values) exercising the fused K|V projection
    # and the attention-matrix-free epilogue.
    out2, attn2 = spectral_interaction_layer(
        params, queries, keys_in, keys_in, attn_mask, n_heads, output_attention=False)
    jax.block_until_ready(out2)
    assert out2.shape == (B, L, d_model)
    assert attn2 is None

    print("KERNEL_OK")
</pallas_src>

<mosaic_0001>
module attributes {stable_mosaic.version = 11 : i64} {
  func.func @_linear_resident_kernel(%arg0: i32, %arg1: memref<16x32xf32, #tpu.memory_space<vmem>>, %arg2: memref<32x32xf32, #tpu.memory_space<vmem>>, %arg3: memref<1x32xf32, #tpu.memory_space<vmem>>, %arg4: memref<16x32xf32, #tpu.memory_space<vmem>>) attributes {dimension_semantics = [#tpu.dimension_semantics<parallel>], iteration_bounds = array<i64: 1>, scalar_prefetch = 0 : i64, scratch_operands = 0 : i64, tpu.core_type = #tpu.core_type<tc>, window_params = [{transform_indices = @transform_0, window_bounds = array<i64: 16, 32>}, {pipeline_mode = #tpu.pipeline_mode<synchronous>, transform_indices = @transform_1, window_bounds = array<i64: 32, 32>}, {pipeline_mode = #tpu.pipeline_mode<synchronous>, transform_indices = @transform_2, window_bounds = array<i64: 1, 32>}, {transform_indices = @transform_3, window_bounds = array<i64: 16, 32>}]} {
    %c0 = arith.constant 0 : index
    %c0_0 = arith.constant 0 : index
    %0 = vector.load %arg1[%c0, %c0_0] : memref<16x32xf32, #tpu.memory_space<vmem>>, vector<16x32xf32>
    %1 = arith.truncf %0 : vector<16x32xf32> to vector<16x32xbf16>
    %c0_1 = arith.constant 0 : index
    %c0_2 = arith.constant 0 : index
    %2 = vector.load %arg2[%c0_1, %c0_2] : memref<32x32xf32, #tpu.memory_space<vmem>>, vector<32x32xf32>
    %3 = arith.truncf %2 : vector<32x32xf32> to vector<32x32xbf16>
    %cst = arith.constant dense<0.000000e+00> : vector<16x32xf32>
    %4 = tpu.matmul %1, %3, %cst {dimension_numbers = #tpu.dot_dimension_numbers<[1], [0], [0], [1], [0, 0, 1, 1], [], []>} : vector<16x32xbf16>, vector<32x32xbf16>, vector<16x32xf32> -> vector<16x32xf32>
    %c0_3 = arith.constant 0 : index
    %c0_4 = arith.constant 0 : index
    %5 = vector.load %arg3[%c0_3, %c0_4] : memref<1x32xf32, #tpu.memory_space<vmem>>, vector<1x32xf32>
    %6 = vector.broadcast %5 : vector<1x32xf32> to vector<16x32xf32>
    %7 = arith.addf %4, %6 : vector<16x32xf32>
    %c0_5 = arith.constant 0 : index
    %c0_6 = arith.constant 0 : index
    %8 = vector.load %arg4[%c0_5, %c0_6] : memref<16x32xf32, #tpu.memory_space<vmem>>, vector<16x32xf32>
    tpu.vector_store %arg4[%c0_5, %c0_6], %7 {strides = array<i32>} : memref<16x32xf32, #tpu.memory_space<vmem>>, vector<16x32xf32>,
    return
  }
  func.func @transform_0(%arg0: i32) -> (i32, i32) {
    %c0_i32 = arith.constant 0 : i32
    %c0_i32_0 = arith.constant 0 : i32
    return %arg0, %c0_i32 : i32, i32
  }
  func.func @transform_1(%arg0: i32) -> (i32, i32) {
    %c0_i32 = arith.constant 0 : i32
    %c0_i32_0 = arith.constant 0 : i32
    %c0_i32_1 = arith.constant 0 : i32
    return %c0_i32, %c0_i32_0 : i32, i32
  }
  func.func @transform_2(%arg0: i32) -> (i32, i32) {
    %c0_i32 = arith.constant 0 : i32
    %c0_i32_0 = arith.constant 0 : i32
    %c0_i32_1 = arith.constant 0 : i32
    return %c0_i32, %c0_i32_0 : i32, i32
  }
  func.func @transform_3(%arg0: i32) -> (i32, i32) {
    %c0_i32 = arith.constant 0 : i32
    %c0_i32_0 = arith.constant 0 : i32
    return %arg0, %c0_i32 : i32, i32
  }
}

</mosaic_0001>

<llo_original>
// kernel: tpu_custom_call.1
$region0: #{tpu_custom_call.1}
  #allocation0 [shape = 'u32[]', space=smem, size = 0x4, offset = 0x4, fixed_abs, tag = 'smem constant byte address 0x4 - core index']
  #allocation1 [shape = 'u32[144,128]{1,0:T(1,128)}', space=vmem, size = 0x12000, scoped, tag = 'internal scratch']
  %s0 = inlined_call_operand.hbm [shape: f32[16,32], index: 0, kind: input, shape index: {}]
  %s1 = inlined_call_operand.hbm [shape: f32[32,32], index: 1, kind: input, shape index: {}]
  %s2 = inlined_call_operand.vmem [shape: f32[1,32], index: 2, kind: input, shape index: {}]
  %s3 = inlined_call_operand.hbm [shape: f32[16,32], index: 3, kind: output, shape index: {}]
  %s4 = sld [smem:[#allocation0]]
  $region30: #{tpu_custom_call.1} parent=0
    _
  %s6 = ssub.s32 1, %s4
  %s7 = scalar_select 0, %s6, %s4
  $region1: #{tpu_custom_call.1} parent=0
    #allocation2 [shape = 'u8[8192]{0}', space=vmem, size = 0x2000, scoped, tag = 'input window, operand 0, single buffered']
    #allocation3 [shape = 's32[1]{0}', space=sflag, size = 0x4, scoped, tag = 'scoped memory for tpu_custom_call.1']
    #allocation4 [shape = 's32[1]{0}', space=sflag, size = 0x4, scoped, tag = 'scoped memory for tpu_custom_call.1']
    #allocation5 [shape = 'u8[16384]{0}', space=vmem, size = 0x4000, scoped, tag = 'input window, operand 1, single buffered']
    #allocation6 [shape = 's32[1]{0}', space=sflag, size = 0x4, scoped, tag = 'scoped memory for tpu_custom_call.1']
    #allocation7 [shape = 'u8[8192]{0}', space=vmem, size = 0x2000, scoped, tag = 'output window, operand 0, single buffered']
    %8 = vsyncpa [#allocation3], 0
    %9 = vsyncpa [#allocation6], 0
    %10 = vsyncpa [#allocation4], 0
    // Predicated region
    $region2: #{tpu_custom_call.1} parent=1 // pred_check
      _
    $region3: #{tpu_custom_call.1} parent=1 // pred_check_branch
      %12 = sbr.rel (0) target = $region5
    $region4: #{tpu_custom_call.1} parent=1 // pred_region
      %s14 = ssub.s32 256, 256
      %15 = vsyncadd [#allocation3], %s14
      %s16 = sshll.u32 [#allocation2], 4
      %s17 = int_to_ptr.vmem [resolvable:$true] %s16
      %22 = dma.hbm_to_vmem [thread:$0]  %s0, 256, %s17, [#allocation3], 128, 128, 8
    $region5: #{tpu_custom_call.1} parent=1 // pred_fallthru
      _
    // Predicated region
    $region6: #{tpu_custom_call.1} parent=1 // pred_check
      _
    $region7: #{tpu_custom_call.1} parent=1 // pred_check_branch
      %24 = sbr.rel (0) target = $region9
    $region8: #{tpu_custom_call.1} parent=1 // pred_region
      %s26 = ssub.s32 512, 512
      %27 = vsyncadd [#allocation6], %s26
      %s28 = sshll.u32 [#allocation5], 4
      %s29 = int_to_ptr.vmem [resolvable:$true] %s28
      %34 = dma.hbm_to_vmem [thread:$0]  %s1, 512, %s29, [#allocation6], 128, 128, 8
    $region9: #{tpu_custom_call.1} parent=1 // pred_fallthru
      _
    // Predicated region
    $region10: #{tpu_custom_call.1} parent=1 // pred_check
      _
    $region11: #{tpu_custom_call.1} parent=1 // pred_check_branch
      %36 = sbr.rel (0) target = $region13
    $region12: #{tpu_custom_call.1} parent=1 // pred_region
      _
    $region13: #{tpu_custom_call.1} parent=1 // pred_fallthru
      _
    // Predicated region
    $region14: #{tpu_custom_call.1} parent=1 // pred_check
      _
    $region15: #{tpu_custom_call.1} parent=1 // pred_check_branch
      %38 = sbr.rel (0) target = $region17
    $region16: #{tpu_custom_call.1} parent=1 // pred_region
      %39 = dma.done [#allocation3], 256
    $region17: #{tpu_custom_call.1} parent=1 // pred_fallthru
      _
    // Predicated region
    $region18: #{tpu_custom_call.1} parent=1 // pred_check
      _
    $region19: #{tpu_custom_call.1} parent=1 // pred_check_branch
      %41 = sbr.rel (0) target = $region21
    $region20: #{tpu_custom_call.1} parent=1 // pred_region
      %42 = dma.done [#allocation6], 512
    $region21: #{tpu_custom_call.1} parent=1 // pred_fallthru
      _
    %v44 = vld [vmem:[#allocation2] sm:$0xff]
    %v45 = vld [vmem:[#allocation2 + $0x8] sm:$0xff]
    %v46 = vpack.c.bf16 %v45, %v44
    %v47 = vld [vmem:[#allocation5] sm:$0xff]
    %v48 = vld [vmem:[#allocation5 + $0x8] sm:$0xff]
    %v49 = vld [vmem:[#allocation5 + $0x10] sm:$0xff]
    %v50 = vld [vmem:[#allocation5 + $0x18] sm:$0xff]
    %v51 = vpack.c.bf16 %v48, %v47
    %v52 = vpack.c.bf16 %v50, %v49
    %v53 = vld [vmem:[%s2] sm:$0x1]
    %v55 = vlaneseq
    %v56 = vshrl.u32 %v55, 7
    %v57 = vsub.s32 0, %v56
    %v58 = vrot.slane %v53, %v57
    %vm60 = vcmask 261120
    %v62 = vsel %vm60, %v46, 0
    %64 = vmatprep.subr.bf16.mxu0 0
    %65 = vmatpush1.bf16.msra.mxu0 %v51
    %66 = vmatprep.subr.bf16.mxu0 0
    %67 = vmatpush1.bf16.msra.mxu0 %v52
    %68 = vmatprep.subr.bf16.mxu0 0
    %69 = vmatpush1.bf16.msra.mxu0 0
    %70 = vmatprep.subr.bf16.mxu0 0
    %71 = vmatpush1.bf16.msra.mxu0 0
    %72 = vmatprep.subr.bf16.mxu0 0
    %73 = vmatpush1.bf16.msra.mxu0 0
    %74 = vmatprep.subr.bf16.mxu0 0
    %75 = vmatpush1.bf16.msra.mxu0 0
    %76 = vmatprep.subr.bf16.mxu0 0
    %77 = vmatpush1.bf16.msra.mxu0 0
    %78 = vmatprep.subr.bf16.mxu0 0
    %79 = vmatpush1.bf16.msra.mxu0 0
    %80 = vmatprep.subr.bf16.mxu0 0
    %81 = vmatpush1.bf16.msra.mxu0 0
    %82 = vmatprep.subr.bf16.mxu0 0
    %83 = vmatpush1.bf16.msra.mxu0 0
    %84 = vmatprep.subr.bf16.mxu0 0
    %85 = vmatpush1.bf16.msra.mxu0 0
    %86 = vmatprep.subr.bf16.mxu0 0
    %87 = vmatpush1.bf16.msra.mxu0 0
    %88 = vmatprep.subr.bf16.mxu0 0
    %89 = vmatpush1.bf16.msra.mxu0 0
    %90 = vmatprep.subr.bf16.mxu0 0
    %91 = vmatpush1.bf16.msra.mxu0 0
    %92 = vmatprep.subr.bf16.mxu0 0
    %93 = vmatpush1.bf16.msra.mxu0 0
    %94 = vmatprep.subr.bf16.mxu0 0
    %95 = vmatpush1.bf16.msra.mxu0 0
    %96 = vmatprep.mubr.bf16.mxu0 0
    %97 = vmatmul.mubr.bf16.gmra.mrb[0].mxu0 %v62
    %v98 = vpop.f32.mrb[0].mxu0
    %v99 = vadd.f32 %v58, %v98
    %v100 = vpop.f32.mrb[0].mxu0
    %v101 = vpop.f32.mrb[0].mxu0
    %v102 = vadd.f32 %v58, %v101
    %v103 = vpop.f32.mrb[0].mxu0
    %104 = vdwg.mxu0
    %105 = vst.msk [vmem:[#allocation7] sm:$0xff] %vm60, %v99
    %106 = vst.msk [vmem:[#allocation7 + $0x8] sm:$0xff] %vm60, %v102
    // Predicated region
    $region22: #{tpu_custom_call.1} parent=1 // pred_check
      _
    $region23: #{tpu_custom_call.1} parent=1 // pred_check_branch
      %108 = sbr.rel (0) target = $region25
    $region24: #{tpu_custom_call.1} parent=1 // pred_region
      %s110 = ssub.s32 256, 256
      %111 = vsyncadd [#allocation4], %s110
      %s112 = sshll.u32 [#allocation7], 4
      %s113 = int_to_ptr.vmem [resolvable:$true] %s112
      %118 = dma.vmem_to_hbm [thread:$0]  %s113, 256, %s3, [#allocation4], 128, 128, 8
    $region25: #{tpu_custom_call.1} parent=1 // pred_fallthru
      _
    // Predicated region
    $region26: #{tpu_custom_call.1} parent=1 // pred_check
      _
    $region27: #{tpu_custom_call.1} parent=1 // pred_check_branch
      %120 = sbr.rel (0) target = $region29
    $region28: #{tpu_custom_call.1} parent=1 // pred_region
      %121 = dma.done [#allocation4], 256
    $region29: #{tpu_custom_call.1} parent=1 // pred_fallthru
      _
    %122 = vsyncpa [#allocation3], 1
    %123 = vsyncpa [#allocation6], 1
    %124 = vsyncpa [#allocation4], 1

</llo_original>
